<compile_context>
chip_gen: v7x
topology: tpu7x:2x2x1
jax: 0.10.0
libtpu: 0.0.40
codegen_flags: <defaults>
</compile_context>

<pallas_src>
import functools

import jax
import jax.numpy as jnp
from jax.experimental import pallas as pl
from jax.experimental.pallas import tpu as pltpu


def _round_up(x, m):
    return (x + m - 1) // m * m


def mul_attention_kernel(h_ref, c_ref, w_in_t_ref, b_in_ref,
                         w_out_a_t_ref, w_out_b_t_ref, b_out_ref,
                         out_ref, attn_ref):
    """One (TB, D) batch tile.  Elementwise math in f32, MXU operands in bf16."""
    h_mx = h_ref[...].astype(w_in_t_ref.dtype)            # (TB, D) bf16 for MXU
    c = c_ref[...].astype(jnp.float32)                     # (TB, D) f32

    # target = linear_in(h): bf16 x bf16 MXU, f32 accumulation.
    target = jnp.dot(h_mx, w_in_t_ref[...],
                     preferred_element_type=jnp.float32) + b_in_ref[...]

    # attn = softmax(context * target, axis=1), max-stabilized, exact divide.
    logits = c * target
    m = jnp.max(logits, axis=-1, keepdims=True)
    e = jnp.exp(logits - m)
    attn = e / jnp.sum(e, axis=-1, keepdims=True)

    # weighted_context = attn * context
    weighted = attn * c

    # lang = tanh(weighted @ Wa.T + h @ Wb.T + b_out)
    # (cat([weighted, h]) @ W_out.T split algebraically -> no concat in-kernel)
    lang = (jnp.dot(weighted.astype(w_out_a_t_ref.dtype), w_out_a_t_ref[...],
                    preferred_element_type=jnp.float32)
            + jnp.dot(h_mx, w_out_b_t_ref[...],
                      preferred_element_type=jnp.float32)
            + b_out_ref[...])

    out_ref[...] = jnp.tanh(lang).astype(out_ref.dtype)
    attn_ref[...] = attn.astype(attn_ref.dtype)


def prepare_mul_attention_params(w_in, b_in, w_out, b_out,
                                 weight_dtype=jnp.bfloat16):
    """One-time (init-time) layout prep: transpose/split weights, cast to bf16."""
    D = w_in.shape[0]
    return {
        "w_in_t":    jnp.asarray(w_in.T, weight_dtype),          # (D, D)
        "w_out_a_t": jnp.asarray(w_out[:, :D].T, weight_dtype),  # (D, D) * weighted_ctx
        "w_out_b_t": jnp.asarray(w_out[:, D:].T, weight_dtype),  # (D, D) * h
        "b_in":      jnp.asarray(b_in, jnp.float32).reshape(1, D),
        "b_out":     jnp.asarray(b_out, jnp.float32).reshape(1, D),
    }


def _vmem_capacity_bytes():
    """Per-core VMEM capacity; conservative fallback if the query fails."""
    try:
        cap = int(pltpu.get_tpu_info().vmem_capacity_bytes)
        if cap > 0:
            return cap
    except Exception:
        pass
    return 64 << 20  # v7x per-TensorCore = smallest of v5e / v6e / v7x


@functools.lru_cache(maxsize=None)
def _build_call(B, D, TB, wdtype_name, lang_dtype_name, attn_dtype_name,
                single_buffer_weights, parallel, vmem_limit):
    wdtype = jnp.dtype(wdtype_name)
    lang_dtype = jnp.dtype(lang_dtype_name)
    attn_dtype = jnp.dtype(attn_dtype_name)

    act_spec = pl.BlockSpec((TB, D), lambda i: (i, 0))      # per-step batch tile
    if single_buffer_weights:
        # Grid-invariant operands: double-buffering buys nothing -> halve VMEM.
        w_spec = pl.BlockSpec((D, D), lambda i: (0, 0), pipeline_mode=pl.Buffered(1))
        b_spec = pl.BlockSpec((1, D), lambda i: (0, 0), pipeline_mode=pl.Buffered(1))
    else:
        w_spec = pl.BlockSpec((D, D), lambda i: (0, 0))
        b_spec = pl.BlockSpec((1, D), lambda i: (0, 0))

    wbytes = wdtype.itemsize
    cost = pl.CostEstimate(
        flops=int(6 * B * D * D),                      # three (TB,D)x(D,D) GEMMs
        transcendentals=int(2 * B * D),                # exp + tanh
        bytes_accessed=int(3 * D * D * wbytes + 2 * D * 4
                           + B * D * (2 * 4 + lang_dtype.itemsize
                                      + attn_dtype.itemsize)),
    )

    call = pl.pallas_call(
        mul_attention_kernel,
        out_shape=(jax.ShapeDtypeStruct((B, D), lang_dtype),
                   jax.ShapeDtypeStruct((B, D), attn_dtype)),
        grid=(pl.cdiv(B, TB),),
        in_specs=[act_spec, act_spec,
                  w_spec, b_spec,
                  w_spec, w_spec, b_spec],
        out_specs=(act_spec, act_spec),
        compiler_params=pltpu.CompilerParams(
            dimension_semantics=("parallel",) if parallel else ("arbitrary",),
            vmem_limit_bytes=int(vmem_limit)),
        cost_estimate=cost,
    )
    return jax.jit(call)


_SINGLE_BUFFER_OK = True  # flipped off once if pl.Buffered(1) is rejected


def mul_attention(h, context, params, *, block_b=1024,
                  lang_dtype=jnp.bfloat16, attn_dtype=jnp.float32):
    """h, context: (B, D) f32.  params: output of prepare_mul_attention_params.

    Returns (lang_embeds (B, D) lang_dtype, attn (B, D) attn_dtype).
    """
    global _SINGLE_BUFFER_OK
    B, D = h.shape
    wdtype = jnp.dtype(params["w_in_t"].dtype)
    wbytes = wdtype.itemsize
    lang_b = jnp.dtype(lang_dtype).itemsize
    attn_b = jnp.dtype(attn_dtype).itemsize

    # --- VMEM budget & batch-tile sizing, per device generation ---------------
    budget = max(_vmem_capacity_bytes() - (12 << 20), 16 << 20)  # Mosaic headroom
    bias_vmem = 2 * 8 * _round_up(D, 128) * 4                    # padded (1,D) biases
    weights_vmem = 3 * D * D * wbytes + bias_vmem                 # single-buffered
    # Per batch row: 2 f32 inputs + 2 outputs (2x buffered) + ~6 f32 temps + slack.
    row_bytes = int((D * (4 * 4 + 2 * (lang_b + attn_b) + 6 * 4) + 256) * 1.25)
    fit_rows = max(8, (budget - weights_vmem) // row_bytes)

    TB = int(min(block_b, _round_up(B, 8), fit_rows))
    if TB >= 256:
        TB = (TB // 256) * 256      # fills the 256-wide MXU (v6e / v7x)
    elif TB >= 128:
        TB = 128                     # 128-aligned for v5e's 4x128^2 MXU
    else:
        TB = max(8, (TB // 8) * 8)   # sublane-aligned for tiny batches

    grid_steps = pl.cdiv(B, TB)
    # Megacore only when compute-bound; in the weight-streaming regime (small B),
    # "parallel" would make each TensorCore DMA its own copy of the weights.
    parallel = bool(grid_steps >= 2 and B >= 512)

    def _vmem_limit(weight_bufs):
        need = weight_bufs * weights_vmem + TB * row_bytes
        return int(min(need + (8 << 20), budget))

    args = (h, context,
            params["w_in_t"], params["b_in"],
            params["w_out_a_t"], params["w_out_b_t"], params["b_out"])
    key = (B, D, TB, wdtype.name, jnp.dtype(lang_dtype).name,
           jnp.dtype(attn_dtype).name)

    if _SINGLE_BUFFER_OK:
        try:
            fn = _build_call(*key, True, parallel, _vmem_limit(1))
            return fn(*args)
        except Exception:
            # This JAX/Mosaic build rejected Buffered(1); fall back to the
            # default (double-buffered) invariant-weight specs.
            _SINGLE_BUFFER_OK = False
    fn = _build_call(*key, False, parallel, _vmem_limit(2))
    return fn(*args)


def mul_attention_ref(h, context, w_in, b_in, w_out, b_out):
    """Pure-JAX f32 reference matching the PyTorch module."""
    target = h @ w_in.T + b_in
    attn = jax.nn.softmax(context * target, axis=1)
    weighted = attn * context
    lang = jnp.tanh(jnp.concatenate([weighted, h], axis=1) @ w_out.T + b_out)
    return lang, attn


if __name__ == "__main__":
    B, D = 8, 128
    key = jax.random.PRNGKey(0)
    k_h, k_c, k_wi, k_bi, k_wo, k_bo = jax.random.split(key, 6)

    h = jax.random.normal(k_h, (B, D), jnp.float32)
    context = jax.random.normal(k_c, (B, D), jnp.float32)

    # nn.Linear default-style init, deterministic (no checkpoint loading).
    bound_in = 1.0 / (D ** 0.5)
    w_in = jax.random.uniform(k_wi, (D, D), jnp.float32, -bound_in, bound_in)
    b_in = jax.random.uniform(k_bi, (D,), jnp.float32, -bound_in, bound_in)
    bound_out = 1.0 / ((2 * D) ** 0.5)
    w_out = jax.random.uniform(k_wo, (D, 2 * D), jnp.float32, -bound_out, bound_out)
    b_out = jax.random.uniform(k_bo, (D,), jnp.float32, -bound_out, bound_out)

    # One-time parameter layout prep (hoisted out of the per-call path).
    params = prepare_mul_attention_params(w_in, b_in, w_out, b_out)

    lang, attn = mul_attention(h, context, params)
    jax.block_until_ready((lang, attn))

    lang_ref, attn_ref = mul_attention_ref(h, context, w_in, b_in, w_out, b_out)
    assert lang.shape == (B, D) and attn.shape == (B, D)
    # bf16 MXU weights + bf16 lang output -> slightly looser tolerance than f32.
    assert jnp.allclose(lang.astype(jnp.float32), lang_ref,
                        atol=3e-2, rtol=3e-2), "lang mismatch"
    assert jnp.allclose(attn, attn_ref, atol=2e-3, rtol=5e-2), "attn mismatch"

    print("KERNEL_OK")
</pallas_src>

<mosaic_0001>
module attributes {stable_mosaic.version = 11 : i64} {
  func.func @mul_attention_kernel(%arg0: i32, %arg1: memref<8x128xf32, #tpu.memory_space<vmem>>, %arg2: memref<8x128xf32, #tpu.memory_space<vmem>>, %arg3: memref<128x128xbf16, #tpu.memory_space<vmem>>, %arg4: memref<1x128xf32, #tpu.memory_space<vmem>>, %arg5: memref<128x128xbf16, #tpu.memory_space<vmem>>, %arg6: memref<128x128xbf16, #tpu.memory_space<vmem>>, %arg7: memref<1x128xf32, #tpu.memory_space<vmem>>, %arg8: memref<8x128xbf16, #tpu.memory_space<vmem>>, %arg9: memref<8x128xf32, #tpu.memory_space<vmem>>) attributes {dimension_semantics = [#tpu.dimension_semantics<arbitrary>], iteration_bounds = array<i64: 1>, scalar_prefetch = 0 : i64, scratch_operands = 0 : i64, tpu.core_type = #tpu.core_type<tc>, window_params = [{transform_indices = @transform_0, window_bounds = array<i64: 8, 128>}, {transform_indices = @transform_1, window_bounds = array<i64: 8, 128>}, {pipeline_mode = #tpu.pipeline_mode<synchronous>, transform_indices = @transform_2, window_bounds = array<i64: 128, 128>}, {pipeline_mode = #tpu.pipeline_mode<synchronous>, transform_indices = @transform_3, window_bounds = array<i64: 1, 128>}, {pipeline_mode = #tpu.pipeline_mode<synchronous>, transform_indices = @transform_4, window_bounds = array<i64: 128, 128>}, {pipeline_mode = #tpu.pipeline_mode<synchronous>, transform_indices = @transform_5, window_bounds = array<i64: 128, 128>}, {pipeline_mode = #tpu.pipeline_mode<synchronous>, transform_indices = @transform_6, window_bounds = array<i64: 1, 128>}, {transform_indices = @transform_7, window_bounds = array<i64: 8, 128>}, {transform_indices = @transform_8, window_bounds = array<i64: 8, 128>}]} {
    %c0 = arith.constant 0 : index
    %c0_0 = arith.constant 0 : index
    %0 = vector.load %arg1[%c0, %c0_0] : memref<8x128xf32, #tpu.memory_space<vmem>>, vector<8x128xf32>
    %1 = arith.truncf %0 : vector<8x128xf32> to vector<8x128xbf16>
    %c0_1 = arith.constant 0 : index
    %c0_2 = arith.constant 0 : index
    %2 = vector.load %arg2[%c0_1, %c0_2] : memref<8x128xf32, #tpu.memory_space<vmem>>, vector<8x128xf32>
    %c0_3 = arith.constant 0 : index
    %c0_4 = arith.constant 0 : index
    %3 = vector.load %arg3[%c0_3, %c0_4] : memref<128x128xbf16, #tpu.memory_space<vmem>>, vector<128x128xbf16>
    %cst = arith.constant dense<0.000000e+00> : vector<8x128xf32>
    %4 = tpu.matmul %1, %3, %cst {dimension_numbers = #tpu.dot_dimension_numbers<[1], [0], [0], [1], [0, 0, 1, 1], [], []>} : vector<8x128xbf16>, vector<128x128xbf16>, vector<8x128xf32> -> vector<8x128xf32>
    %c0_5 = arith.constant 0 : index
    %c0_6 = arith.constant 0 : index
    %5 = vector.load %arg4[%c0_5, %c0_6] : memref<1x128xf32, #tpu.memory_space<vmem>>, vector<1x128xf32>
    %6 = vector.broadcast %5 : vector<1x128xf32> to vector<8x128xf32>
    %7 = arith.addf %4, %6 : vector<8x128xf32>
    %8 = arith.mulf %2, %7 : vector<8x128xf32>
    %cst_7 = arith.constant dense<0xFF800000> : vector<8xf32>
    %9 = vector.multi_reduction <maximumf>, %8, %cst_7 [1] : vector<8x128xf32> to vector<8xf32>
    %10 = vector.shape_cast %9 : vector<8xf32> to vector<8x1xf32>
    %11 = vector.broadcast %10 : vector<8x1xf32> to vector<8x128xf32>
    %12 = arith.subf %8, %11 : vector<8x128xf32>
    %13 = math.exp %12 : vector<8x128xf32>
    %cst_8 = arith.constant dense<0.000000e+00> : vector<8xf32>
    %14 = vector.multi_reduction <add>, %13, %cst_8 [1] : vector<8x128xf32> to vector<8xf32>
    %15 = vector.shape_cast %14 : vector<8xf32> to vector<8x1xf32>
    %16 = vector.broadcast %15 : vector<8x1xf32> to vector<8x128xf32>
    %17 = arith.divf %13, %16 : vector<8x128xf32>
    %18 = arith.mulf %17, %2 : vector<8x128xf32>
    %19 = arith.truncf %18 : vector<8x128xf32> to vector<8x128xbf16>
    %c0_9 = arith.constant 0 : index
    %c0_10 = arith.constant 0 : index
    %20 = vector.load %arg5[%c0_9, %c0_10] : memref<128x128xbf16, #tpu.memory_space<vmem>>, vector<128x128xbf16>
    %cst_11 = arith.constant dense<0.000000e+00> : vector<8x128xf32>
    %21 = tpu.matmul %19, %20, %cst_11 {dimension_numbers = #tpu.dot_dimension_numbers<[1], [0], [0], [1], [0, 0, 1, 1], [], []>} : vector<8x128xbf16>, vector<128x128xbf16>, vector<8x128xf32> -> vector<8x128xf32>
    %c0_12 = arith.constant 0 : index
    %c0_13 = arith.constant 0 : index
    %22 = vector.load %arg6[%c0_12, %c0_13] : memref<128x128xbf16, #tpu.memory_space<vmem>>, vector<128x128xbf16>
    %cst_14 = arith.constant dense<0.000000e+00> : vector<8x128xf32>
    %23 = tpu.matmul %1, %22, %cst_14 {dimension_numbers = #tpu.dot_dimension_numbers<[1], [0], [0], [1], [0, 0, 1, 1], [], []>} : vector<8x128xbf16>, vector<128x128xbf16>, vector<8x128xf32> -> vector<8x128xf32>
    %24 = arith.addf %21, %23 : vector<8x128xf32>
    %c0_15 = arith.constant 0 : index
    %c0_16 = arith.constant 0 : index
    %25 = vector.load %arg7[%c0_15, %c0_16] : memref<1x128xf32, #tpu.memory_space<vmem>>, vector<1x128xf32>
    %26 = vector.broadcast %25 : vector<1x128xf32> to vector<8x128xf32>
    %27 = arith.addf %24, %26 : vector<8x128xf32>
    %28 = math.tanh %27 : vector<8x128xf32>
    %29 = arith.truncf %28 : vector<8x128xf32> to vector<8x128xbf16>
    %c0_17 = arith.constant 0 : index
    %c0_18 = arith.constant 0 : index
    %30 = vector.load %arg8[%c0_17, %c0_18] : memref<8x128xbf16, #tpu.memory_space<vmem>>, vector<8x128xbf16>
    tpu.vector_store %arg8[%c0_17, %c0_18], %29 {strides = array<i32>} : memref<8x128xbf16, #tpu.memory_space<vmem>>, vector<8x128xbf16>,
    %c0_19 = arith.constant 0 : index
    %c0_20 = arith.constant 0 : index
    %31 = vector.load %arg9[%c0_19, %c0_20] : memref<8x128xf32, #tpu.memory_space<vmem>>, vector<8x128xf32>
    tpu.vector_store %arg9[%c0_19, %c0_20], %17 {strides = array<i32>} : memref<8x128xf32, #tpu.memory_space<vmem>>, vector<8x128xf32>,
    return
  }
  func.func @transform_0(%arg0: i32) -> (i32, i32) {
    %c0_i32 = arith.constant 0 : i32
    %c0_i32_0 = arith.constant 0 : i32
    return %arg0, %c0_i32 : i32, i32
  }
  func.func @transform_1(%arg0: i32) -> (i32, i32) {
    %c0_i32 = arith.constant 0 : i32
    %c0_i32_0 = arith.constant 0 : i32
    return %arg0, %c0_i32 : i32, i32
  }
  func.func @transform_2(%arg0: i32) -> (i32, i32) {
    %c0_i32 = arith.constant 0 : i32
    %c0_i32_0 = arith.constant 0 : i32
    %c0_i32_1 = arith.constant 0 : i32
    return %c0_i32, %c0_i32_0 : i32, i32
  }
  func.func @transform_3(%arg0: i32) -> (i32, i32) {
    %c0_i32 = arith.constant 0 : i32
    %c0_i32_0 = arith.constant 0 : i32
    %c0_i32_1 = arith.constant 0 : i32
    return %c0_i32, %c0_i32_0 : i32, i32
  }
  func.func @transform_4(%arg0: i32) -> (i32, i32) {
    %c0_i32 = arith.constant 0 : i32
    %c0_i32_0 = arith.constant 0 : i32
    %c0_i32_1 = arith.constant 0 : i32
    return %c0_i32, %c0_i32_0 : i32, i32
  }
  func.func @transform_5(%arg0: i32) -> (i32, i32) {
    %c0_i32 = arith.constant 0 : i32
    %c0_i32_0 = arith.constant 0 : i32
    %c0_i32_1 = arith.constant 0 : i32
    return %c0_i32, %c0_i32_0 : i32, i32
  }
  func.func @transform_6(%arg0: i32) -> (i32, i32) {
    %c0_i32 = arith.constant 0 : i32
    %c0_i32_0 = arith.constant 0 : i32
    %c0_i32_1 = arith.constant 0 : i32
    return %c0_i32, %c0_i32_0 : i32, i32
  }
  func.func @transform_7(%arg0: i32) -> (i32, i32) {
    %c0_i32 = arith.constant 0 : i32
    %c0_i32_0 = arith.constant 0 : i32
    return %arg0, %c0_i32 : i32, i32
  }
  func.func @transform_8(%arg0: i32) -> (i32, i32) {
    %c0_i32 = arith.constant 0 : i32
    %c0_i32_0 = arith.constant 0 : i32
    return %arg0, %c0_i32 : i32, i32
  }
}

module attributes {stable_mosaic.version = 11 : i64} {
  func.func @mul_attention_kernel(%arg0: i32, %arg1: memref<8x128xf32, #tpu.memory_space<vmem>>, %arg2: memref<8x128xf32, #tpu.memory_space<vmem>>, %arg3: memref<128x128xbf16, #tpu.memory_space<vmem>>, %arg4: memref<1x128xf32, #tpu.memory_space<vmem>>, %arg5: memref<128x128xbf16, #tpu.memory_space<vmem>>, %arg6: memref<128x128xbf16, #tpu.memory_space<vmem>>, %arg7: memref<1x128xf32, #tpu.memory_space<vmem>>, %arg8: memref<8x128xbf16, #tpu.memory_space<vmem>>, %arg9: memref<8x128xf32, #tpu.memory_space<vmem>>) attributes {dimension_semantics = [#tpu.dimension_semantics<arbitrary>], iteration_bounds = array<i64: 1>, scalar_prefetch = 0 : i64, scratch_operands = 0 : i64, tpu.core_type = #tpu.core_type<tc>, window_params = [{transform_indices = @transform_0, window_bounds = array<i64: 8, 128>}, {transform_indices = @transform_1, window_bounds = array<i64: 8, 128>}, {pipeline_mode = #tpu.pipeline_mode<synchronous>, transform_indices = @transform_2, window_bounds = array<i64: 128, 128>}, {pipeline_mode = #tpu.pipeline_mode<synchronous>, transform_indices = @transform_3, window_bounds = array<i64: 1, 128>}, {pipeline_mode = #tpu.pipeline_mode<synchronous>, transform_indices = @transform_4, window_bounds = array<i64: 128, 128>}, {pipeline_mode = #tpu.pipeline_mode<synchronous>, transform_indices = @transform_5, window_bounds = array<i64: 128, 128>}, {pipeline_mode = #tpu.pipeline_mode<synchronous>, transform_indices = @transform_6, window_bounds = array<i64: 1, 128>}, {transform_indices = @transform_7, window_bounds = array<i64: 8, 128>}, {transform_indices = @transform_8, window_bounds = array<i64: 8, 128>}]} {
    %c0 = arith.constant 0 : index
    %c0_0 = arith.constant 0 : index
    %0 = vector.load %arg1[%c0, %c0_0] : memref<8x128xf32, #tpu.memory_space<vmem>>, vector<8x128xf32>
    %1 = arith.truncf %0 : vector<8x128xf32> to vector<8x128xbf16>
    %c0_1 = arith.constant 0 : index
    %c0_2 = arith.constant 0 : index
    %2 = vector.load %arg2[%c0_1, %c0_2] : memref<8x128xf32, #tpu.memory_space<vmem>>, vector<8x128xf32>
    %c0_3 = arith.constant 0 : index
    %c0_4 = arith.constant 0 : index
    %3 = vector.load %arg3[%c0_3, %c0_4] : memref<128x128xbf16, #tpu.memory_space<vmem>>, vector<128x128xbf16>
    %cst = arith.constant dense<0.000000e+00> : vector<8x128xf32>
    %4 = tpu.matmul %1, %3, %cst {dimension_numbers = #tpu.dot_dimension_numbers<[1], [0], [0], [1], [0, 0, 1, 1], [], []>} : vector<8x128xbf16>, vector<128x128xbf16>, vector<8x128xf32> -> vector<8x128xf32>
    %c0_5 = arith.constant 0 : index
    %c0_6 = arith.constant 0 : index
    %5 = vector.load %arg4[%c0_5, %c0_6] : memref<1x128xf32, #tpu.memory_space<vmem>>, vector<1x128xf32>
    %6 = vector.broadcast %5 : vector<1x128xf32> to vector<8x128xf32>
    %7 = arith.addf %4, %6 : vector<8x128xf32>
    %8 = arith.mulf %2, %7 : vector<8x128xf32>
    %cst_7 = arith.constant dense<0xFF800000> : vector<8xf32>
    %9 = vector.multi_reduction <maximumf>, %8, %cst_7 [1] : vector<8x128xf32> to vector<8xf32>
    %10 = vector.shape_cast %9 : vector<8xf32> to vector<8x1xf32>
    %11 = vector.broadcast %10 : vector<8x1xf32> to vector<8x128xf32>
    %12 = arith.subf %8, %11 : vector<8x128xf32>
    %13 = math.exp %12 : vector<8x128xf32>
    %cst_8 = arith.constant dense<0.000000e+00> : vector<8xf32>
    %14 = vector.multi_reduction <add>, %13, %cst_8 [1] : vector<8x128xf32> to vector<8xf32>
    %15 = vector.shape_cast %14 : vector<8xf32> to vector<8x1xf32>
    %16 = vector.broadcast %15 : vector<8x1xf32> to vector<8x128xf32>
    %17 = arith.divf %13, %16 : vector<8x128xf32>
    %18 = arith.mulf %17, %2 : vector<8x128xf32>
    %19 = arith.truncf %18 : vector<8x128xf32> to vector<8x128xbf16>
    %c0_9 = arith.constant 0 : index
    %c0_10 = arith.constant 0 : index
    %20 = vector.load %arg5[%c0_9, %c0_10] : memref<128x128xbf16, #tpu.memory_space<vmem>>, vector<128x128xbf16>
    %cst_11 = arith.constant dense<0.000000e+00> : vector<8x128xf32>
    %21 = tpu.matmul %19, %20, %cst_11 {dimension_numbers = #tpu.dot_dimension_numbers<[1], [0], [0], [1], [0, 0, 1, 1], [], []>} : vector<8x128xbf16>, vector<128x128xbf16>, vector<8x128xf32> -> vector<8x128xf32>
    %c0_12 = arith.constant 0 : index
    %c0_13 = arith.constant 0 : index
    %22 = vector.load %arg6[%c0_12, %c0_13] : memref<128x128xbf16, #tpu.memory_space<vmem>>, vector<128x128xbf16>
    %cst_14 = arith.constant dense<0.000000e+00> : vector<8x128xf32>
    %23 = tpu.matmul %1, %22, %cst_14 {dimension_numbers = #tpu.dot_dimension_numbers<[1], [0], [0], [1], [0, 0, 1, 1], [], []>} : vector<8x128xbf16>, vector<128x128xbf16>, vector<8x128xf32> -> vector<8x128xf32>
    %24 = arith.addf %21, %23 : vector<8x128xf32>
    %c0_15 = arith.constant 0 : index
    %c0_16 = arith.constant 0 : index
    %25 = vector.load %arg7[%c0_15, %c0_16] : memref<1x128xf32, #tpu.memory_space<vmem>>, vector<1x128xf32>
    %26 = vector.broadcast %25 : vector<1x128xf32> to vector<8x128xf32>
    %27 = arith.addf %24, %26 : vector<8x128xf32>
    %28 = math.tanh %27 : vector<8x128xf32>
    %29 = arith.truncf %28 : vector<8x128xf32> to vector<8x128xbf16>
    %c0_17 = arith.constant 0 : index
    %c0_18 = arith.constant 0 : index
    %30 = vector.load %arg8[%c0_17, %c0_18] : memref<8x128xbf16, #tpu.memory_space<vmem>>, vector<8x128xbf16>
    tpu.vector_store %arg8[%c0_17, %c0_18], %29 {strides = array<i32>} : memref<8x128xbf16, #tpu.memory_space<vmem>>, vector<8x128xbf16>,
    %c0_19 = arith.constant 0 : index
    %c0_20 = arith.constant 0 : index
    %31 = vector.load %arg9[%c0_19, %c0_20] : memref<8x128xf32, #tpu.memory_space<vmem>>, vector<8x128xf32>
    tpu.vector_store %arg9[%c0_19, %c0_20], %17 {strides = array<i32>} : memref<8x128xf32, #tpu.memory_space<vmem>>, vector<8x128xf32>,
    return
  }
  func.func @transform_0(%arg0: i32) -> (i32, i32) {
    %c0_i32 = arith.constant 0 : i32
    %c0_i32_0 = arith.constant 0 : i32
    return %arg0, %c0_i32 : i32, i32
  }
  func.func @transform_1(%arg0: i32) -> (i32, i32) {
    %c0_i32 = arith.constant 0 : i32
    %c0_i32_0 = arith.constant 0 : i32
    return %arg0, %c0_i32 : i32, i32
  }
  func.func @transform_2(%arg0: i32) -> (i32, i32) {
    %c0_i32 = arith.constant 0 : i32
    %c0_i32_0 = arith.constant 0 : i32
    %c0_i32_1 = arith.constant 0 : i32
    return %c0_i32, %c0_i32_0 : i32, i32
  }
  func.func @transform_3(%arg0: i32) -> (i32, i32) {
    %c0_i32 = arith.constant 0 : i32
    %c0_i32_0 = arith.constant 0 : i32
    %c0_i32_1 = arith.constant 0 : i32
    return %c0_i32, %c0_i32_0 : i32, i32
  }
  func.func @transform_4(%arg0: i32) -> (i32, i32) {
    %c0_i32 = arith.constant 0 : i32
    %c0_i32_0 = arith.constant 0 : i32
    %c0_i32_1 = arith.constant 0 : i32
    return %c0_i32, %c0_i32_0 : i32, i32
  }
  func.func @transform_5(%arg0: i32) -> (i32, i32) {
    %c0_i32 = arith.constant 0 : i32
    %c0_i32_0 = arith.constant 0 : i32
    %c0_i32_1 = arith.constant 0 : i32
    return %c0_i32, %c0_i32_0 : i32, i32
  }
  func.func @transform_6(%arg0: i32) -> (i32, i32) {
    %c0_i32 = arith.constant 0 : i32
    %c0_i32_0 = arith.constant 0 : i32
    %c0_i32_1 = arith.constant 0 : i32
    return %c0_i32, %c0_i32_0 : i32, i32
  }
  func.func @transform_7(%arg0: i32) -> (i32, i32) {
    %c0_i32 = arith.constant 0 : i32
    %c0_i32_0 = arith.constant 0 : i32
    return %arg0, %c0_i32 : i32, i32
  }
  func.func @transform_8(%arg0: i32) -> (i32, i32) {
    %c0_i32 = arith.constant 0 : i32
    %c0_i32_0 = arith.constant 0 : i32
    return %arg0, %c0_i32 : i32, i32
  }
}

</mosaic_0001>

<llo_original>
// kernel: tpu_custom_call.1
$region0: #{tpu_custom_call.1}
  #allocation0 [shape = 'u32[]', space=smem, size = 0x4, offset = 0x4, fixed_abs, tag = 'smem constant byte address 0x4 - core index']
  #allocation1 [shape = 'u32[144,128]{1,0:T(1,128)}', space=vmem, size = 0x12000, scoped, tag = 'internal scratch']
  %s0 = inlined_call_operand.hbm [shape: f32[8,128], index: 0, kind: input, shape index: {}]
  %s1 = inlined_call_operand.hbm [shape: f32[8,128], index: 1, kind: input, shape index: {}]
  %s2 = inlined_call_operand.hbm [shape: bf16[128,128], index: 2, kind: input, shape index: {}]
  %s3 = inlined_call_operand.vmem [shape: f32[1,128], index: 3, kind: input, shape index: {}]
  %s4 = inlined_call_operand.hbm [shape: bf16[128,128], index: 4, kind: input, shape index: {}]
  %s5 = inlined_call_operand.hbm [shape: bf16[128,128], index: 5, kind: input, shape index: {}]
  %s6 = inlined_call_operand.vmem [shape: f32[1,128], index: 6, kind: input, shape index: {}]
  %s7 = inlined_call_operand.hbm [shape: bf16[8,128], index: 7, kind: output, shape index: {0}]
  %s8 = inlined_call_operand.hbm [shape: f32[8,128], index: 8, kind: output, shape index: {1}]
  %9 = xla_tuple %s7, %s8
  %s10 = sld [smem:[#allocation0]]
  $region66: #{tpu_custom_call.1} parent=0
    _
  %s12 = ssub.s32 1, %s10
  %s13 = scalar_select 0, %s12, %s10
  $region1: #{tpu_custom_call.1} parent=0
    #allocation2 [shape = 'u8[4096]{0}', space=vmem, size = 0x1000, scoped, tag = 'input window, operand 0, single buffered']
    #allocation3 [shape = 's32[1]{0}', space=sflag, size = 0x4, scoped, tag = 'scoped memory for tpu_custom_call.1']
    #allocation4 [shape = 's32[1]{0}', space=sflag, size = 0x4, scoped, tag = 'scoped memory for tpu_custom_call.1']
    #allocation5 [shape = 'u8[4096]{0}', space=vmem, size = 0x1000, scoped, tag = 'input window, operand 1, single buffered']
    #allocation6 [shape = 's32[1]{0}', space=sflag, size = 0x4, scoped, tag = 'scoped memory for tpu_custom_call.1']
    #allocation7 [shape = 'u8[32768]{0}', space=vmem, size = 0x8000, scoped, tag = 'input window, operand 2, single buffered']
    #allocation8 [shape = 'u8[32768]{0}', space=vmem, size = 0x8000, scoped, tag = 'input window, operand 4, single buffered']
    #allocation9 [shape = 's32[1]{0}', space=sflag, size = 0x4, scoped, tag = 'scoped memory for tpu_custom_call.1']
    #allocation10 [shape = 'u8[32768]{0}', space=vmem, size = 0x8000, scoped, tag = 'input window, operand 5, single buffered']
    #allocation11 [shape = 'u8[2048]{0}', space=vmem, size = 0x800, scoped, tag = 'output window, operand 0, single buffered']
    #allocation12 [shape = 'u8[4096]{0}', space=vmem, size = 0x1000, scoped, tag = 'output window, operand 1, single buffered']
    #allocation13 [shape = 's32[1]{0}', space=sflag, size = 0x4, scoped, tag = 'scoped memory for tpu_custom_call.1']
    %14 = vsyncpa [#allocation3], 0
    %15 = vsyncpa [#allocation6], 0
    %16 = vsyncpa [#allocation9], 0
    %17 = vsyncpa [#allocation4], 0
    %18 = vsyncpa [#allocation13], 0
    // Predicated region
    $region2: #{tpu_custom_call.1} parent=1 // pred_check
      _
    $region3: #{tpu_custom_call.1} parent=1 // pred_check_branch
      %20 = sbr.rel (0) target = $region5
    $region4: #{tpu_custom_call.1} parent=1 // pred_region
      %s22 = ssub.s32 128, 128
      %23 = vsyncadd [#allocation3], %s22
      %s25 = sshll.u32 [#allocation2], 4
      %s26 = int_to_ptr.vmem [resolvable:$true] %s25
      %28 = dma.hbm_to_vmem [thread:$0]  %s0, 128, %s26, [#allocation3]
    $region5: #{tpu_custom_call.1} parent=1 // pred_fallthru
      _
    // Predicated region
    $region6: #{tpu_custom_call.1} parent=1 // pred_check
      _
    $region7: #{tpu_custom_call.1} parent=1 // pred_check_branch
      %30 = sbr.rel (0) target = $region9
    $region8: #{tpu_custom_call.1} parent=1 // pred_region
      %s32 = ssub.s32 128, 128
      %33 = vsyncadd [#allocation6], %s32
      %s35 = sshll.u32 [#allocation5], 4
      %s36 = int_to_ptr.vmem [resolvable:$true] %s35
      %38 = dma.hbm_to_vmem [thread:$0]  %s1, 128, %s36, [#allocation6]
    $region9: #{tpu_custom_call.1} parent=1 // pred_fallthru
      _
    // Predicated region
    $region10: #{tpu_custom_call.1} parent=1 // pred_check
      _
    $region11: #{tpu_custom_call.1} parent=1 // pred_check_branch
      %40 = sbr.rel (0) target = $region13
    $region12: #{tpu_custom_call.1} parent=1 // pred_region
      %s42 = ssub.s32 1024, 1024
      %43 = vsyncadd [#allocation6], %s42
      %s44 = sshll.u32 [#allocation7], 4
      %s45 = int_to_ptr.vmem [resolvable:$true] %s44
      %50 = dma.hbm_to_vmem [thread:$0]  %s2, 1024, %s45, [#allocation6], 64, 64, 4
    $region13: #{tpu_custom_call.1} parent=1 // pred_fallthru
      _
    // Predicated region
    $region14: #{tpu_custom_call.1} parent=1 // pred_check
      _
    $region15: #{tpu_custom_call.1} parent=1 // pred_check_branch
      %52 = sbr.rel (0) target = $region17
    $region16: #{tpu_custom_call.1} parent=1 // pred_region
      _
    $region17: #{tpu_custom_call.1} parent=1 // pred_fallthru
      _
    // Predicated region
    $region18: #{tpu_custom_call.1} parent=1 // pred_check
      _
    $region19: #{tpu_custom_call.1} parent=1 // pred_check_branch
      %54 = sbr.rel (0) target = $region21
    $region20: #{tpu_custom_call.1} parent=1 // pred_region
      %s56 = ssub.s32 1024, 1024
      %57 = vsyncadd [#allocation9], %s56
      %s58 = sshll.u32 [#allocation8], 4
      %s59 = int_to_ptr.vmem [resolvable:$true] %s58
      %64 = dma.hbm_to_vmem [thread:$0]  %s4, 1024, %s59, [#allocation9], 64, 64, 4
    $region21: #{tpu_custom_call.1} parent=1 // pred_fallthru
      _
    // Predicated region
    $region22: #{tpu_custom_call.1} parent=1 // pred_check
      _
    $region23: #{tpu_custom_call.1} parent=1 // pred_check_branch
      %66 = sbr.rel (0) target = $region25
    $region24: #{tpu_custom_call.1} parent=1 // pred_region
      %s68 = ssub.s32 1024, 1024
      %69 = vsyncadd [#allocation9], %s68
      %s70 = sshll.u32 [#allocation10], 4
      %s71 = int_to_ptr.vmem [resolvable:$true] %s70
      %76 = dma.hbm_to_vmem [thread:$0]  %s5, 1024, %s71, [#allocation9], 64, 64, 4
    $region25: #{tpu_custom_call.1} parent=1 // pred_fallthru
      _
    // Predicated region
    $region26: #{tpu_custom_call.1} parent=1 // pred_check
      _
    $region27: #{tpu_custom_call.1} parent=1 // pred_check_branch
      %78 = sbr.rel (0) target = $region29
    $region28: #{tpu_custom_call.1} parent=1 // pred_region
      _
    $region29: #{tpu_custom_call.1} parent=1 // pred_fallthru
      _
    // Predicated region
    $region30: #{tpu_custom_call.1} parent=1 // pred_check
      _
    $region31: #{tpu_custom_call.1} parent=1 // pred_check_branch
      %80 = sbr.rel (0) target = $region33
    $region32: #{tpu_custom_call.1} parent=1 // pred_region
      %81 = dma.done [#allocation3], 128
    $region33: #{tpu_custom_call.1} parent=1 // pred_fallthru
      _
    // Predicated region
    $region34: #{tpu_custom_call.1} parent=1 // pred_check
      _
    $region35: #{tpu_custom_call.1} parent=1 // pred_check_branch
      %83 = sbr.rel (0) target = $region37
    $region36: #{tpu_custom_call.1} parent=1 // pred_region
      %84 = dma.done [#allocation6], 128
    $region37: #{tpu_custom_call.1} parent=1 // pred_fallthru
      _
    // Predicated region
    $region38: #{tpu_custom_call.1} parent=1 // pred_check
      _
    $region39: #{tpu_custom_call.1} parent=1 // pred_check_branch
      %86 = sbr.rel (0) target = $region41
    $region40: #{tpu_custom_call.1} parent=1 // pred_region
      %87 = dma.done [#allocation6], 1024
    $region41: #{tpu_custom_call.1} parent=1 // pred_fallthru
      _
    // Predicated region
    $region42: #{tpu_custom_call.1} parent=1 // pred_check
      _
    $region43: #{tpu_custom_call.1} parent=1 // pred_check_branch
      %89 = sbr.rel (0) target = $region45
    $region44: #{tpu_custom_call.1} parent=1 // pred_region
      %90 = dma.done [#allocation9], 1024
    $region45: #{tpu_custom_call.1} parent=1 // pred_fallthru
      _
    // Predicated region
    $region46: #{tpu_custom_call.1} parent=1 // pred_check
      _
    $region47: #{tpu_custom_call.1} parent=1 // pred_check_branch
      %92 = sbr.rel (0) target = $region49
    $region48: #{tpu_custom_call.1} parent=1 // pred_region
      %93 = dma.done [#allocation9], 1024
    $region49: #{tpu_custom_call.1} parent=1 // pred_fallthru
      _
    %v95 = vld [vmem:[#allocation2] sm:$0xff]
    %v96 = vpack.c.bf16 %v95, %v95
    %v97 = vld [vmem:[#allocation5] sm:$0xff]
    %v98 = vld [vmem:[#allocation7] sm:$0xf]
    %v99 = vld [vmem:[#allocation7 + $0x4] sm:$0xf]
    %v100 = vld [vmem:[#allocation7 + $0x8] sm:$0xf]
    %v101 = vld [vmem:[#allocation7 + $0xc] sm:$0xf]
    %v102 = vld [vmem:[#allocation7 + $0x10] sm:$0xf]
    %v103 = vld [vmem:[#allocation7 + $0x14] sm:$0xf]
    %v104 = vld [vmem:[#allocation7 + $0x18] sm:$0xf]
    %v105 = vld [vmem:[#allocation7 + $0x1c] sm:$0xf]
    %v106 = vld [vmem:[#allocation7 + $0x20] sm:$0xf]
    %v107 = vld [vmem:[#allocation7 + $0x24] sm:$0xf]
    %v108 = vld [vmem:[#allocation7 + $0x28] sm:$0xf]
    %v109 = vld [vmem:[#allocation7 + $0x2c] sm:$0xf]
    %v110 = vld [vmem:[#allocation7 + $0x30] sm:$0xf]
    %v111 = vld [vmem:[#allocation7 + $0x34] sm:$0xf]
    %v112 = vld [vmem:[#allocation7 + $0x38] sm:$0xf]
    %v113 = vld [vmem:[#allocation7 + $0x3c] sm:$0xf]
    %v114 = vld [vmem:[%s3] sm:$0x1]
    %v116 = vlaneseq
    %v117 = vshrl.u32 %v116, 7
    %v118 = vsub.s32 0, %v117
    %v119 = vrot.slane %v114, %v118
    %v137 = vunpack.c.l.b16 %v98
    %v138 = vunpack.c.l.b16 %v99
    %v139 = vunpack.c.l.b16 %v100
    %v140 = vunpack.c.l.b16 %v101
    %v141 = vunpack.c.l.b16 %v102
    %v142 = vunpack.c.l.b16 %v103
    %v143 = vunpack.c.l.b16 %v104
    %v144 = vunpack.c.l.b16 %v105
    %v145 = vunpack.c.l.b16 %v106
    %v146 = vunpack.c.l.b16 %v107
    %v147 = vunpack.c.l.b16 %v108
    %v148 = vunpack.c.l.b16 %v109
    %v149 = vunpack.c.l.b16 %v110
    %v150 = vunpack.c.l.b16 %v111
    %v151 = vunpack.c.l.b16 %v112
    %v152 = vunpack.c.l.b16 %v113
    %v153 = vpack.c.b16 %v138, %v137
    %v154 = vpack.c.b16 %v140, %v139
    %v155 = vpack.c.b16 %v142, %v141
    %v156 = vpack.c.b16 %v144, %v143
    %v157 = vpack.c.b16 %v146, %v145
    %v158 = vpack.c.b16 %v148, %v147
    %v159 = vpack.c.b16 %v150, %v149
    %v160 = vpack.c.b16 %v152, %v151
    %169 = vmatprep.subr.bf16.mxu0 0
    %170 = vmatpush1.bf16.msra.mxu0 %v153
    %171 = vmatprep.subr.bf16.mxu0 0
    %172 = vmatpush1.bf16.msra.mxu0 %v154
    %173 = vmatprep.subr.bf16.mxu0 0
    %174 = vmatpush1.bf16.msra.mxu0 %v155
    %175 = vmatprep.subr.bf16.mxu0 0
    %176 = vmatpush1.bf16.msra.mxu0 %v156
    %177 = vmatprep.subr.bf16.mxu0 0
    %178 = vmatpush1.bf16.msra.mxu0 %v157
    %179 = vmatprep.subr.bf16.mxu0 0
    %180 = vmatpush1.bf16.msra.mxu0 %v158
    %181 = vmatprep.subr.bf16.mxu0 0
    %182 = vmatpush1.bf16.msra.mxu0 %v159
    %183 = vmatprep.subr.bf16.mxu0 0
    %184 = vmatpush1.bf16.msra.mxu0 %v160
    %185 = vmatprep.subr.bf16.mxu0 0
    %186 = vmatpush1.bf16.msra.mxu0 0
    %187 = vmatprep.subr.bf16.mxu0 0
    %188 = vmatpush1.bf16.msra.mxu0 0
    %189 = vmatprep.subr.bf16.mxu0 0
    %190 = vmatpush1.bf16.msra.mxu0 0
    %191 = vmatprep.subr.bf16.mxu0 0
    %192 = vmatpush1.bf16.msra.mxu0 0
    %193 = vmatprep.subr.bf16.mxu0 0
    %194 = vmatpush1.bf16.msra.mxu0 0
    %195 = vmatprep.subr.bf16.mxu0 0
    %196 = vmatpush1.bf16.msra.mxu0 0
    %197 = vmatprep.subr.bf16.mxu0 0
    %198 = vmatpush1.bf16.msra.mxu0 0
    %199 = vmatprep.subr.bf16.mxu0 0
    %200 = vmatpush1.bf16.msra.mxu0 0
    %201 = vmatprep.mubr.bf16.mxu0 0
    %202 = vmatmul.mubr.bf16.gmra.mrb[0].mxu0 %v96
    %v203 = vpop.f32.mrb[0].mxu0
    %v204 = vadd.f32 %v119, %v203
    %v205 = vpop.f32.mrb[0].mxu0
    %v206 = vpop.f32.mrb[0].mxu0
    %v207 = vpop.f32.mrb[0].mxu0
    %208 = vdwg.mxu0
    %v209 = vmul.f32 %v97, %v204
    %210 = vmax.xlane.f32.xlu0 %v209
    %v211 = vpop.xlane.xlu0 %210
    %v212 = vsub.f32 %v209, %v211
    %v213 = vmul.f32 %v212, 1.442695
    %v214 = vpow.pop %v213
    %215 = vadd.xlane.f32.xlu0 %v214
    %v216 = vpop.xlane.xlu0 %215
    %v217 = vrcp.pop %v216
    %v218 = vmul.f32 %v214, %v217
    %v219 = vmul.f32 %v218, %v97
    %v220 = vpack.c.bf16 %v219, %v219
    %v221 = vld [vmem:[#allocation8] sm:$0xf]
    %v222 = vld [vmem:[#allocation8 + $0x4] sm:$0xf]
    %v223 = vld [vmem:[#allocation8 + $0x8] sm:$0xf]
    %v224 = vld [vmem:[#allocation8 + $0xc] sm:$0xf]
    %v225 = vld [vmem:[#allocation8 + $0x10] sm:$0xf]
    %v226 = vld [vmem:[#allocation8 + $0x14] sm:$0xf]
    %v227 = vld [vmem:[#allocation8 + $0x18] sm:$0xf]
    %v228 = vld [vmem:[#allocation8 + $0x1c] sm:$0xf]
    %v229 = vld [vmem:[#allocation8 + $0x20] sm:$0xf]
    %v230 = vld [vmem:[#allocation8 + $0x24] sm:$0xf]
    %v231 = vld [vmem:[#allocation8 + $0x28] sm:$0xf]
    %v232 = vld [vmem:[#allocation8 + $0x2c] sm:$0xf]
    %v233 = vld [vmem:[#allocation8 + $0x30] sm:$0xf]
    %v234 = vld [vmem:[#allocation8 + $0x34] sm:$0xf]
    %v235 = vld [vmem:[#allocation8 + $0x38] sm:$0xf]
    %v236 = vld [vmem:[#allocation8 + $0x3c] sm:$0xf]
    %v237 = vld [vmem:[#allocation10] sm:$0xf]
    %v238 = vld [vmem:[#allocation10 + $0x4] sm:$0xf]
    %v239 = vld [vmem:[#allocation10 + $0x8] sm:$0xf]
    %v240 = vld [vmem:[#allocation10 + $0xc] sm:$0xf]
    %v241 = vld [vmem:[#allocation10 + $0x10] sm:$0xf]
    %v242 = vld [vmem:[#allocation10 + $0x14] sm:$0xf]
    %v243 = vld [vmem:[#allocation10 + $0x18] sm:$0xf]
    %v244 = vld [vmem:[#allocation10 + $0x1c] sm:$0xf]
    %v245 = vld [vmem:[#allocation10 + $0x20] sm:$0xf]
    %v246 = vld [vmem:[#allocation10 + $0x24] sm:$0xf]
    %v247 = vld [vmem:[#allocation10 + $0x28] sm:$0xf]
    %v248 = vld [vmem:[#allocation10 + $0x2c] sm:$0xf]
    %v249 = vld [vmem:[#allocation10 + $0x30] sm:$0xf]
    %v250 = vld [vmem:[#allocation10 + $0x34] sm:$0xf]
    %v251 = vld [vmem:[#allocation10 + $0x38] sm:$0xf]
    %v252 = vld [vmem:[#allocation10 + $0x3c] sm:$0xf]
    %v269 = vunpack.c.l.b16 %v237
    %v270 = vunpack.c.l.b16 %v238
    %v271 = vunpack.c.l.b16 %v239
    %v272 = vunpack.c.l.b16 %v240
    %v273 = vunpack.c.l.b16 %v241
    %v274 = vunpack.c.l.b16 %v242
    %v275 = vunpack.c.l.b16 %v243
    %v276 = vunpack.c.l.b16 %v244
    %v277 = vunpack.c.l.b16 %v245
    %v278 = vunpack.c.l.b16 %v246
    %v279 = vunpack.c.l.b16 %v247
    %v280 = vunpack.c.l.b16 %v248
    %v281 = vunpack.c.l.b16 %v249
    %v282 = vunpack.c.l.b16 %v250
    %v283 = vunpack.c.l.b16 %v251
    %v284 = vunpack.c.l.b16 %v252
    %v285 = vpack.c.b16 %v270, %v269
    %v286 = vpack.c.b16 %v272, %v271
    %v287 = vpack.c.b16 %v274, %v273
    %v288 = vpack.c.b16 %v276, %v275
    %v289 = vpack.c.b16 %v278, %v277
    %v290 = vpack.c.b16 %v280, %v279
    %v291 = vpack.c.b16 %v282, %v281
    %v292 = vpack.c.b16 %v284, %v283
    %301 = vmatprep.subr.bf16.mxu0 0
    %302 = vmatpush1.bf16.msra.mxu0 %v285
    %303 = vmatprep.subr.bf16.mxu0 0
    %304 = vmatpush1.bf16.msra.mxu0 %v286
    %305 = vmatprep.subr.bf16.mxu0 0
    %306 = vmatpush1.bf16.msra.mxu0 %v287
    %307 = vmatprep.subr.bf16.mxu0 0
    %308 = vmatpush1.bf16.msra.mxu0 %v288
    %309 = vmatprep.subr.bf16.mxu0 0
    %310 = vmatpush1.bf16.msra.mxu0 %v289
    %311 = vmatprep.subr.bf16.mxu0 0
    %312 = vmatpush1.bf16.msra.mxu0 %v290
    %313 = vmatprep.subr.bf16.mxu0 0
    %314 = vmatpush1.bf16.msra.mxu0 %v291
    %315 = vmatprep.subr.bf16.mxu0 0
    %316 = vmatpush1.bf16.msra.mxu0 %v292
    %317 = vmatprep.subr.bf16.mxu0 0
    %318 = vmatpush1.bf16.msra.mxu0 0
    %319 = vmatprep.subr.bf16.mxu0 0
    %320 = vmatpush1.bf16.msra.mxu0 0
    %321 = vmatprep.subr.bf16.mxu0 0
    %322 = vmatpush1.bf16.msra.mxu0 0
    %323 = vmatprep.subr.bf16.mxu0 0
    %324 = vmatpush1.bf16.msra.mxu0 0
    %325 = vmatprep.subr.bf16.mxu0 0
    %326 = vmatpush1.bf16.msra.mxu0 0
    %327 = vmatprep.subr.bf16.mxu0 0
    %328 = vmatpush1.bf16.msra.mxu0 0
    %329 = vmatprep.subr.bf16.mxu0 0
    %330 = vmatpush1.bf16.msra.mxu0 0
    %331 = vmatprep.subr.bf16.mxu0 0
    %332 = vmatpush1.bf16.msra.mxu0 0
    %333 = vmatprep.mubr.bf16.mxu0 0
    %334 = vmatmul.mubr.bf16.gmra.mrb[0].mxu0 %v96
    %v335 = vpop.f32.mrb[0].mxu0
    %v336 = vadd.f32 0.0, %v335
    %v337 = vpop.f32.mrb[0].mxu0
    %v338 = vpop.f32.mrb[0].mxu0
    %v339 = vpop.f32.mrb[0].mxu0
    %340 = vdwg.mxu0
    %v357 = vunpack.c.l.b16 %v221
    %v358 = vunpack.c.l.b16 %v222
    %v359 = vunpack.c.l.b16 %v223
    %v360 = vunpack.c.l.b16 %v224
    %v361 = vunpack.c.l.b16 %v225
    %v362 = vunpack.c.l.b16 %v226
    %v363 = vunpack.c.l.b16 %v227
    %v364 = vunpack.c.l.b16 %v228
    %v365 = vunpack.c.l.b16 %v229
    %v366 = vunpack.c.l.b16 %v230
    %v367 = vunpack.c.l.b16 %v231
    %v368 = vunpack.c.l.b16 %v232
    %v369 = vunpack.c.l.b16 %v233
    %v370 = vunpack.c.l.b16 %v234
    %v371 = vunpack.c.l.b16 %v235
    %v372 = vunpack.c.l.b16 %v236
    %v373 = vpack.c.b16 %v358, %v357
    %v374 = vpack.c.b16 %v360, %v359
    %v375 = vpack.c.b16 %v362, %v361
    %v376 = vpack.c.b16 %v364, %v363
    %v377 = vpack.c.b16 %v366, %v365
    %v378 = vpack.c.b16 %v368, %v367
    %v379 = vpack.c.b16 %v370, %v369
    %v380 = vpack.c.b16 %v372, %v371
    %389 = vmatprep.subr.bf16.mxu0 0
    %390 = vmatpush1.bf16.msra.mxu0 %v373
    %391 = vmatprep.subr.bf16.mxu0 0
    %392 = vmatpush1.bf16.msra.mxu0 %v374
    %393 = vmatprep.subr.bf16.mxu0 0
    %394 = vmatpush1.bf16.msra.mxu0 %v375
    %395 = vmatprep.subr.bf16.mxu0 0
    %396 = vmatpush1.bf16.msra.mxu0 %v376
    %397 = vmatprep.subr.bf16.mxu0 0
    %398 = vmatpush1.bf16.msra.mxu0 %v377
    %399 = vmatprep.subr.bf16.mxu0 0
    %400 = vmatpush1.bf16.msra.mxu0 %v378
    %401 = vmatprep.subr.bf16.mxu0 0
    %402 = vmatpush1.bf16.msra.mxu0 %v379
    %403 = vmatprep.subr.bf16.mxu0 0
    %404 = vmatpush1.bf16.msra.mxu0 %v380
    %405 = vmatprep.subr.bf16.mxu0 0
    %406 = vmatpush1.bf16.msra.mxu0 0
    %407 = vmatprep.subr.bf16.mxu0 0
    %408 = vmatpush1.bf16.msra.mxu0 0
    %409 = vmatprep.subr.bf16.mxu0 0
    %410 = vmatpush1.bf16.msra.mxu0 0
    %411 = vmatprep.subr.bf16.mxu0 0
    %412 = vmatpush1.bf16.msra.mxu0 0
    %413 = vmatprep.subr.bf16.mxu0 0
    %414 = vmatpush1.bf16.msra.mxu0 0
    %415 = vmatprep.subr.bf16.mxu0 0
    %416 = vmatpush1.bf16.msra.mxu0 0
    %417 = vmatprep.subr.bf16.mxu0 0
    %418 = vmatpush1.bf16.msra.mxu0 0
    %419 = vmatprep.subr.bf16.mxu0 0
    %420 = vmatpush1.bf16.msra.mxu0 0
    %421 = vmatprep.mubr.bf16.mxu0 0
    %422 = vmatmul.mubr.bf16.gmra.mrb[0].mxu0 %v220
    %v423 = vpop.f32.mrb[0].mxu0
    %v424 = vadd.f32 %v336, %v423
    %v425 = vpop.f32.mrb[0].mxu0
    %v426 = vpop.f32.mrb[0].mxu0
    %v427 = vpop.f32.mrb[0].mxu0
    %428 = vdwg.mxu0
    %v429 = vld [vmem:[%s6] sm:$0x1]
    %v431 = vlaneseq
    %v432 = vshrl.u32 %v431, 7
    %v433 = vsub.s32 0, %v432
    %v434 = vrot.slane %v429, %v433
    %v436 = vadd.f32 %v424, %v434
    %v437 = vtanh.pop %v436
    %v438 = vpack.c.bf16 %v437, %v437
    %439 = vst [vmem:[#allocation11] sm:$0xf] %v438
    %440 = vst [vmem:[#allocation12] sm:$0xff] %v218
    // Predicated region
    $region50: #{tpu_custom_call.1} parent=1 // pred_check
      _
    $region51: #{tpu_custom_call.1} parent=1 // pred_check_branch
      %442 = sbr.rel (0) target = $region53
    $region52: #{tpu_custom_call.1} parent=1 // pred_region
      %s444 = ssub.s32 64, 64
      %445 = vsyncadd [#allocation4], %s444
      %s447 = sshll.u32 [#allocation11], 4
      %s448 = int_to_ptr.vmem [resolvable:$true] %s447
      %450 = dma.vmem_to_hbm [thread:$0]  %s448, 64, %s7, [#allocation4]
    $region53: #{tpu_custom_call.1} parent=1 // pred_fallthru
      _
    // Predicated region
    $region54: #{tpu_custom_call.1} parent=1 // pred_check
      _
    $region55: #{tpu_custom_call.1} parent=1 // pred_check_branch
      %452 = sbr.rel (0) target = $region57
    $region56: #{tpu_custom_call.1} parent=1 // pred_region
      %s454 = ssub.s32 128, 128
      %455 = vsyncadd [#allocation13], %s454
      %s457 = sshll.u32 [#allocation12], 4
      %s458 = int_to_ptr.vmem [resolvable:$true] %s457
      %460 = dma.vmem_to_hbm [thread:$0]  %s458, 128, %s8, [#allocation13]
    $region57: #{tpu_custom_call.1} parent=1 // pred_fallthru
      _
    // Predicated region
    $region58: #{tpu_custom_call.1} parent=1 // pred_check
      _
    $region59: #{tpu_custom_call.1} parent=1 // pred_check_branch
      %462 = sbr.rel (0) target = $region61
    $region60: #{tpu_custom_call.1} parent=1 // pred_region
      %463 = dma.done [#allocation4], 64
    $region61: #{tpu_custom_call.1} parent=1 // pred_fallthru
      _
    // Predicated region
    $region62: #{tpu_custom_call.1} parent=1 // pred_check
      _
    $region63: #{tpu_custom_call.1} parent=1 // pred_check_branch
      %465 = sbr.rel (0) target = $region65
    $region64: #{tpu_custom_call.1} parent=1 // pred_region
      %466 = dma.done [#allocation13], 128
    $region65: #{tpu_custom_call.1} parent=1 // pred_fallthru
      _
    %467 = vsyncpa [#allocation3], 1
    %468 = vsyncpa [#allocation6], 1
    %469 = vsyncpa [#allocation9], 1
    %470 = vsyncpa [#allocation4], 1
    %471 = vsyncpa [#allocation13], 1

// kernel: tpu_custom_call.1
$region0: #{tpu_custom_call.1}
  #allocation0 [shape = 'u32[]', space=smem, size = 0x4, offset = 0x4, fixed_abs, tag = 'smem constant byte address 0x4 - core index']
  #allocation1 [shape = 'u32[144,128]{1,0:T(1,128)}', space=vmem, size = 0x12000, scoped, tag = 'internal scratch']
  %s0 = inlined_call_operand.hbm [shape: f32[8,128], index: 0, kind: input, shape index: {}]
  %s1 = inlined_call_operand.hbm [shape: f32[8,128], index: 1, kind: input, shape index: {}]
  %s2 = inlined_call_operand.hbm [shape: bf16[128,128], index: 2, kind: input, shape index: {}]
  %s3 = inlined_call_operand.vmem [shape: f32[1,128], index: 3, kind: input, shape index: {}]
  %s4 = inlined_call_operand.hbm [shape: bf16[128,128], index: 4, kind: input, shape index: {}]
  %s5 = inlined_call_operand.hbm [shape: bf16[128,128], index: 5, kind: input, shape index: {}]
  %s6 = inlined_call_operand.vmem [shape: f32[1,128], index: 6, kind: input, shape index: {}]
  %s7 = inlined_call_operand.hbm [shape: bf16[8,128], index: 7, kind: output, shape index: {0}]
  %s8 = inlined_call_operand.hbm [shape: f32[8,128], index: 8, kind: output, shape index: {1}]
  %9 = xla_tuple %s7, %s8
  %s10 = sld [smem:[#allocation0]]
  $region66: #{tpu_custom_call.1} parent=0
    _
  %s12 = ssub.s32 1, %s10
  %s13 = scalar_select 0, %s12, %s10
  $region1: #{tpu_custom_call.1} parent=0
    #allocation2 [shape = 'u8[4096]{0}', space=vmem, size = 0x1000, scoped, tag = 'input window, operand 0, single buffered']
    #allocation3 [shape = 's32[1]{0}', space=sflag, size = 0x4, scoped, tag = 'scoped memory for tpu_custom_call.1']
    #allocation4 [shape = 's32[1]{0}', space=sflag, size = 0x4, scoped, tag = 'scoped memory for tpu_custom_call.1']
    #allocation5 [shape = 'u8[4096]{0}', space=vmem, size = 0x1000, scoped, tag = 'input window, operand 1, single buffered']
    #allocation6 [shape = 's32[1]{0}', space=sflag, size = 0x4, scoped, tag = 'scoped memory for tpu_custom_call.1']
    #allocation7 [shape = 'u8[32768]{0}', space=vmem, size = 0x8000, scoped, tag = 'input window, operand 2, single buffered']
    #allocation8 [shape = 'u8[32768]{0}', space=vmem, size = 0x8000, scoped, tag = 'input window, operand 4, single buffered']
    #allocation9 [shape = 's32[1]{0}', space=sflag, size = 0x4, scoped, tag = 'scoped memory for tpu_custom_call.1']
    #allocation10 [shape = 'u8[32768]{0}', space=vmem, size = 0x8000, scoped, tag = 'input window, operand 5, single buffered']
    #allocation11 [shape = 'u8[2048]{0}', space=vmem, size = 0x800, scoped, tag = 'output window, operand 0, single buffered']
    #allocation12 [shape = 'u8[4096]{0}', space=vmem, size = 0x1000, scoped, tag = 'output window, operand 1, single buffered']
    #allocation13 [shape = 's32[1]{0}', space=sflag, size = 0x4, scoped, tag = 'scoped memory for tpu_custom_call.1']
    %14 = vsyncpa [#allocation3], 0
    %15 = vsyncpa [#allocation6], 0
    %16 = vsyncpa [#allocation9], 0
    %17 = vsyncpa [#allocation4], 0
    %18 = vsyncpa [#allocation13], 0
    // Predicated region
    $region2: #{tpu_custom_call.1} parent=1 // pred_check
      _
    $region3: #{tpu_custom_call.1} parent=1 // pred_check_branch
      %20 = sbr.rel (0) target = $region5
    $region4: #{tpu_custom_call.1} parent=1 // pred_region
      %s22 = ssub.s32 128, 128
      %23 = vsyncadd [#allocation3], %s22
      %s25 = sshll.u32 [#allocation2], 4
      %s26 = int_to_ptr.vmem [resolvable:$true] %s25
      %28 = dma.hbm_to_vmem [thread:$0]  %s0, 128, %s26, [#allocation3]
    $region5: #{tpu_custom_call.1} parent=1 // pred_fallthru
      _
    // Predicated region
    $region6: #{tpu_custom_call.1} parent=1 // pred_check
      _
    $region7: #{tpu_custom_call.1} parent=1 // pred_check_branch
      %30 = sbr.rel (0) target = $region9
    $region8: #{tpu_custom_call.1} parent=1 // pred_region
      %s32 = ssub.s32 128, 128
      %33 = vsyncadd [#allocation6], %s32
      %s35 = sshll.u32 [#allocation5], 4
      %s36 = int_to_ptr.vmem [resolvable:$true] %s35
      %38 = dma.hbm_to_vmem [thread:$0]  %s1, 128, %s36, [#allocation6]
    $region9: #{tpu_custom_call.1} parent=1 // pred_fallthru
      _
    // Predicated region
    $region10: #{tpu_custom_call.1} parent=1 // pred_check
      _
    $region11: #{tpu_custom_call.1} parent=1 // pred_check_branch
      %40 = sbr.rel (0) target = $region13
    $region12: #{tpu_custom_call.1} parent=1 // pred_region
      %s42 = ssub.s32 1024, 1024
      %43 = vsyncadd [#allocation6], %s42
      %s44 = sshll.u32 [#allocation7], 4
      %s45 = int_to_ptr.vmem [resolvable:$true] %s44
      %50 = dma.hbm_to_vmem [thread:$0]  %s2, 1024, %s45, [#allocation6], 64, 64, 4
    $region13: #{tpu_custom_call.1} parent=1 // pred_fallthru
      _
    // Predicated region
    $region14: #{tpu_custom_call.1} parent=1 // pred_check
      _
    $region15: #{tpu_custom_call.1} parent=1 // pred_check_branch
      %52 = sbr.rel (0) target = $region17
    $region16: #{tpu_custom_call.1} parent=1 // pred_region
      _
    $region17: #{tpu_custom_call.1} parent=1 // pred_fallthru
      _
    // Predicated region
    $region18: #{tpu_custom_call.1} parent=1 // pred_check
      _
    $region19: #{tpu_custom_call.1} parent=1 // pred_check_branch
      %54 = sbr.rel (0) target = $region21
    $region20: #{tpu_custom_call.1} parent=1 // pred_region
      %s56 = ssub.s32 1024, 1024
      %57 = vsyncadd [#allocation9], %s56
      %s58 = sshll.u32 [#allocation8], 4
      %s59 = int_to_ptr.vmem [resolvable:$true] %s58
      %64 = dma.hbm_to_vmem [thread:$0]  %s4, 1024, %s59, [#allocation9], 64, 64, 4
    $region21: #{tpu_custom_call.1} parent=1 // pred_fallthru
      _
    // Predicated region
    $region22: #{tpu_custom_call.1} parent=1 // pred_check
      _
    $region23: #{tpu_custom_call.1} parent=1 // pred_check_branch
      %66 = sbr.rel (0) target = $region25
    $region24: #{tpu_custom_call.1} parent=1 // pred_region
      %s68 = ssub.s32 1024, 1024
      %69 = vsyncadd [#allocation9], %s68
      %s70 = sshll.u32 [#allocation10], 4
      %s71 = int_to_ptr.vmem [resolvable:$true] %s70
      %76 = dma.hbm_to_vmem [thread:$0]  %s5, 1024, %s71, [#allocation9], 64, 64, 4
    $region25: #{tpu_custom_call.1} parent=1 // pred_fallthru
      _
    // Predicated region
    $region26: #{tpu_custom_call.1} parent=1 // pred_check
      _
    $region27: #{tpu_custom_call.1} parent=1 // pred_check_branch
      %78 = sbr.rel (0) target = $region29
    $region28: #{tpu_custom_call.1} parent=1 // pred_region
      _
    $region29: #{tpu_custom_call.1} parent=1 // pred_fallthru
      _
    // Predicated region
    $region30: #{tpu_custom_call.1} parent=1 // pred_check
      _
    $region31: #{tpu_custom_call.1} parent=1 // pred_check_branch
      %80 = sbr.rel (0) target = $region33
    $region32: #{tpu_custom_call.1} parent=1 // pred_region
      %81 = dma.done [#allocation3], 128
    $region33: #{tpu_custom_call.1} parent=1 // pred_fallthru
      _
    // Predicated region
    $region34: #{tpu_custom_call.1} parent=1 // pred_check
      _
    $region35: #{tpu_custom_call.1} parent=1 // pred_check_branch
      %83 = sbr.rel (0) target = $region37
    $region36: #{tpu_custom_call.1} parent=1 // pred_region
      %84 = dma.done [#allocation6], 128
    $region37: #{tpu_custom_call.1} parent=1 // pred_fallthru
      _
    // Predicated region
    $region38: #{tpu_custom_call.1} parent=1 // pred_check
      _
    $region39: #{tpu_custom_call.1} parent=1 // pred_check_branch
      %86 = sbr.rel (0) target = $region41
    $region40: #{tpu_custom_call.1} parent=1 // pred_region
      %87 = dma.done [#allocation6], 1024
    $region41: #{tpu_custom_call.1} parent=1 // pred_fallthru
      _
    // Predicated region
    $region42: #{tpu_custom_call.1} parent=1 // pred_check
      _
    $region43: #{tpu_custom_call.1} parent=1 // pred_check_branch
      %89 = sbr.rel (0) target = $region45
    $region44: #{tpu_custom_call.1} parent=1 // pred_region
      %90 = dma.done [#allocation9], 1024
    $region45: #{tpu_custom_call.1} parent=1 // pred_fallthru
      _
    // Predicated region
    $region46: #{tpu_custom_call.1} parent=1 // pred_check
      _
    $region47: #{tpu_custom_call.1} parent=1 // pred_check_branch
      %92 = sbr.rel (0) target = $region49
    $region48: #{tpu_custom_call.1} parent=1 // pred_region
      %93 = dma.done [#allocation9], 1024
    $region49: #{tpu_custom_call.1} parent=1 // pred_fallthru
      _
    %v95 = vld [vmem:[#allocation2] sm:$0xff]
    %v96 = vpack.c.bf16 %v95, %v95
    %v97 = vld [vmem:[#allocation5] sm:$0xff]
    %v98 = vld [vmem:[#allocation7] sm:$0xf]
    %v99 = vld [vmem:[#allocation7 + $0x4] sm:$0xf]
    %v100 = vld [vmem:[#allocation7 + $0x8] sm:$0xf]
    %v101 = vld [vmem:[#allocation7 + $0xc] sm:$0xf]
    %v102 = vld [vmem:[#allocation7 + $0x10] sm:$0xf]
    %v103 = vld [vmem:[#allocation7 + $0x14] sm:$0xf]
    %v104 = vld [vmem:[#allocation7 + $0x18] sm:$0xf]
    %v105 = vld [vmem:[#allocation7 + $0x1c] sm:$0xf]
    %v106 = vld [vmem:[#allocation7 + $0x20] sm:$0xf]
    %v107 = vld [vmem:[#allocation7 + $0x24] sm:$0xf]
    %v108 = vld [vmem:[#allocation7 + $0x28] sm:$0xf]
    %v109 = vld [vmem:[#allocation7 + $0x2c] sm:$0xf]
    %v110 = vld [vmem:[#allocation7 + $0x30] sm:$0xf]
    %v111 = vld [vmem:[#allocation7 + $0x34] sm:$0xf]
    %v112 = vld [vmem:[#allocation7 + $0x38] sm:$0xf]
    %v113 = vld [vmem:[#allocation7 + $0x3c] sm:$0xf]
    %v114 = vld [vmem:[%s3] sm:$0x1]
    %v116 = vlaneseq
    %v117 = vshrl.u32 %v116, 7
    %v118 = vsub.s32 0, %v117
    %v119 = vrot.slane %v114, %v118
    %v137 = vunpack.c.l.b16 %v98
    %v138 = vunpack.c.l.b16 %v99
    %v139 = vunpack.c.l.b16 %v100
    %v140 = vunpack.c.l.b16 %v101
    %v141 = vunpack.c.l.b16 %v102
    %v142 = vunpack.c.l.b16 %v103
    %v143 = vunpack.c.l.b16 %v104
    %v144 = vunpack.c.l.b16 %v105
    %v145 = vunpack.c.l.b16 %v106
    %v146 = vunpack.c.l.b16 %v107
    %v147 = vunpack.c.l.b16 %v108
    %v148 = vunpack.c.l.b16 %v109
    %v149 = vunpack.c.l.b16 %v110
    %v150 = vunpack.c.l.b16 %v111
    %v151 = vunpack.c.l.b16 %v112
    %v152 = vunpack.c.l.b16 %v113
    %v153 = vpack.c.b16 %v138, %v137
    %v154 = vpack.c.b16 %v140, %v139
    %v155 = vpack.c.b16 %v142, %v141
    %v156 = vpack.c.b16 %v144, %v143
    %v157 = vpack.c.b16 %v146, %v145
    %v158 = vpack.c.b16 %v148, %v147
    %v159 = vpack.c.b16 %v150, %v149
    %v160 = vpack.c.b16 %v152, %v151
    %169 = vmatprep.subr.bf16.mxu0 0
    %170 = vmatpush1.bf16.msra.mxu0 %v153
    %171 = vmatprep.subr.bf16.mxu0 0
    %172 = vmatpush1.bf16.msra.mxu0 %v154
    %173 = vmatprep.subr.bf16.mxu0 0
    %174 = vmatpush1.bf16.msra.mxu0 %v155
    %175 = vmatprep.subr.bf16.mxu0 0
    %176 = vmatpush1.bf16.msra.mxu0 %v156
    %177 = vmatprep.subr.bf16.mxu0 0
    %178 = vmatpush1.bf16.msra.mxu0 %v157
    %179 = vmatprep.subr.bf16.mxu0 0
    %180 = vmatpush1.bf16.msra.mxu0 %v158
    %181 = vmatprep.subr.bf16.mxu0 0
    %182 = vmatpush1.bf16.msra.mxu0 %v159
    %183 = vmatprep.subr.bf16.mxu0 0
    %184 = vmatpush1.bf16.msra.mxu0 %v160
    %185 = vmatprep.subr.bf16.mxu0 0
    %186 = vmatpush1.bf16.msra.mxu0 0
    %187 = vmatprep.subr.bf16.mxu0 0
    %188 = vmatpush1.bf16.msra.mxu0 0
    %189 = vmatprep.subr.bf16.mxu0 0
    %190 = vmatpush1.bf16.msra.mxu0 0
    %191 = vmatprep.subr.bf16.mxu0 0
    %192 = vmatpush1.bf16.msra.mxu0 0
    %193 = vmatprep.subr.bf16.mxu0 0
    %194 = vmatpush1.bf16.msra.mxu0 0
    %195 = vmatprep.subr.bf16.mxu0 0
    %196 = vmatpush1.bf16.msra.mxu0 0
    %197 = vmatprep.subr.bf16.mxu0 0
    %198 = vmatpush1.bf16.msra.mxu0 0
    %199 = vmatprep.subr.bf16.mxu0 0
    %200 = vmatpush1.bf16.msra.mxu0 0
    %201 = vmatprep.mubr.bf16.mxu0 0
    %202 = vmatmul.mubr.bf16.gmra.mrb[0].mxu0 %v96
    %v203 = vpop.f32.mrb[0].mxu0
    %v204 = vadd.f32 %v119, %v203
    %v205 = vpop.f32.mrb[0].mxu0
    %v206 = vpop.f32.mrb[0].mxu0
    %v207 = vpop.f32.mrb[0].mxu0
    %208 = vdwg.mxu0
    %v209 = vmul.f32 %v97, %v204
    %210 = vmax.xlane.f32.xlu0 %v209
    %v211 = vpop.xlane.xlu0 %210
    %v212 = vsub.f32 %v209, %v211
    %v213 = vmul.f32 %v212, 1.442695
    %v214 = vpow.pop %v213
    %215 = vadd.xlane.f32.xlu0 %v214
    %v216 = vpop.xlane.xlu0 %215
    %v217 = vrcp.pop %v216
    %v218 = vmul.f32 %v214, %v217
    %v219 = vmul.f32 %v218, %v97
    %v220 = vpack.c.bf16 %v219, %v219
    %v221 = vld [vmem:[#allocation8] sm:$0xf]
    %v222 = vld [vmem:[#allocation8 + $0x4] sm:$0xf]
    %v223 = vld [vmem:[#allocation8 + $0x8] sm:$0xf]
    %v224 = vld [vmem:[#allocation8 + $0xc] sm:$0xf]
    %v225 = vld [vmem:[#allocation8 + $0x10] sm:$0xf]
    %v226 = vld [vmem:[#allocation8 + $0x14] sm:$0xf]
    %v227 = vld [vmem:[#allocation8 + $0x18] sm:$0xf]
    %v228 = vld [vmem:[#allocation8 + $0x1c] sm:$0xf]
    %v229 = vld [vmem:[#allocation8 + $0x20] sm:$0xf]
    %v230 = vld [vmem:[#allocation8 + $0x24] sm:$0xf]
    %v231 = vld [vmem:[#allocation8 + $0x28] sm:$0xf]
    %v232 = vld [vmem:[#allocation8 + $0x2c] sm:$0xf]
    %v233 = vld [vmem:[#allocation8 + $0x30] sm:$0xf]
    %v234 = vld [vmem:[#allocation8 + $0x34] sm:$0xf]
    %v235 = vld [vmem:[#allocation8 + $0x38] sm:$0xf]
    %v236 = vld [vmem:[#allocation8 + $0x3c] sm:$0xf]
    %v237 = vld [vmem:[#allocation10] sm:$0xf]
    %v238 = vld [vmem:[#allocation10 + $0x4] sm:$0xf]
    %v239 = vld [vmem:[#allocation10 + $0x8] sm:$0xf]
    %v240 = vld [vmem:[#allocation10 + $0xc] sm:$0xf]
    %v241 = vld [vmem:[#allocation10 + $0x10] sm:$0xf]
    %v242 = vld [vmem:[#allocation10 + $0x14] sm:$0xf]
    %v243 = vld [vmem:[#allocation10 + $0x18] sm:$0xf]
    %v244 = vld [vmem:[#allocation10 + $0x1c] sm:$0xf]
    %v245 = vld [vmem:[#allocation10 + $0x20] sm:$0xf]
    %v246 = vld [vmem:[#allocation10 + $0x24] sm:$0xf]
    %v247 = vld [vmem:[#allocation10 + $0x28] sm:$0xf]
    %v248 = vld [vmem:[#allocation10 + $0x2c] sm:$0xf]
    %v249 = vld [vmem:[#allocation10 + $0x30] sm:$0xf]
    %v250 = vld [vmem:[#allocation10 + $0x34] sm:$0xf]
    %v251 = vld [vmem:[#allocation10 + $0x38] sm:$0xf]
    %v252 = vld [vmem:[#allocation10 + $0x3c] sm:$0xf]
    %v269 = vunpack.c.l.b16 %v237
    %v270 = vunpack.c.l.b16 %v238
    %v271 = vunpack.c.l.b16 %v239
    %v272 = vunpack.c.l.b16 %v240
    %v273 = vunpack.c.l.b16 %v241
    %v274 = vunpack.c.l.b16 %v242
    %v275 = vunpack.c.l.b16 %v243
    %v276 = vunpack.c.l.b16 %v244
    %v277 = vunpack.c.l.b16 %v245
    %v278 = vunpack.c.l.b16 %v246
    %v279 = vunpack.c.l.b16 %v247
    %v280 = vunpack.c.l.b16 %v248
    %v281 = vunpack.c.l.b16 %v249
    %v282 = vunpack.c.l.b16 %v250
    %v283 = vunpack.c.l.b16 %v251
    %v284 = vunpack.c.l.b16 %v252
    %v285 = vpack.c.b16 %v270, %v269
    %v286 = vpack.c.b16 %v272, %v271
    %v287 = vpack.c.b16 %v274, %v273
    %v288 = vpack.c.b16 %v276, %v275
    %v289 = vpack.c.b16 %v278, %v277
    %v290 = vpack.c.b16 %v280, %v279
    %v291 = vpack.c.b16 %v282, %v281
    %v292 = vpack.c.b16 %v284, %v283
    %301 = vmatprep.subr.bf16.mxu0 0
    %302 = vmatpush1.bf16.msra.mxu0 %v285
    %303 = vmatprep.subr.bf16.mxu0 0
    %304 = vmatpush1.bf16.msra.mxu0 %v286
    %305 = vmatprep.subr.bf16.mxu0 0
    %306 = vmatpush1.bf16.msra.mxu0 %v287
    %307 = vmatprep.subr.bf16.mxu0 0
    %308 = vmatpush1.bf16.msra.mxu0 %v288
    %309 = vmatprep.subr.bf16.mxu0 0
    %310 = vmatpush1.bf16.msra.mxu0 %v289
    %311 = vmatprep.subr.bf16.mxu0 0
    %312 = vmatpush1.bf16.msra.mxu0 %v290
    %313 = vmatprep.subr.bf16.mxu0 0
    %314 = vmatpush1.bf16.msra.mxu0 %v291
    %315 = vmatprep.subr.bf16.mxu0 0
    %316 = vmatpush1.bf16.msra.mxu0 %v292
    %317 = vmatprep.subr.bf16.mxu0 0
    %318 = vmatpush1.bf16.msra.mxu0 0
    %319 = vmatprep.subr.bf16.mxu0 0
    %320 = vmatpush1.bf16.msra.mxu0 0
    %321 = vmatprep.subr.bf16.mxu0 0
    %322 = vmatpush1.bf16.msra.mxu0 0
    %323 = vmatprep.subr.bf16.mxu0 0
    %324 = vmatpush1.bf16.msra.mxu0 0
    %325 = vmatprep.subr.bf16.mxu0 0
    %326 = vmatpush1.bf16.msra.mxu0 0
    %327 = vmatprep.subr.bf16.mxu0 0
    %328 = vmatpush1.bf16.msra.mxu0 0
    %329 = vmatprep.subr.bf16.mxu0 0
    %330 = vmatpush1.bf16.msra.mxu0 0
    %331 = vmatprep.subr.bf16.mxu0 0
    %332 = vmatpush1.bf16.msra.mxu0 0
    %333 = vmatprep.mubr.bf16.mxu0 0
    %334 = vmatmul.mubr.bf16.gmra.mrb[0].mxu0 %v96
    %v335 = vpop.f32.mrb[0].mxu0
    %v336 = vadd.f32 0.0, %v335
    %v337 = vpop.f32.mrb[0].mxu0
    %v338 = vpop.f32.mrb[0].mxu0
    %v339 = vpop.f32.mrb[0].mxu0
    %340 = vdwg.mxu0
    %v357 = vunpack.c.l.b16 %v221
    %v358 = vunpack.c.l.b16 %v222
    %v359 = vunpack.c.l.b16 %v223
    %v360 = vunpack.c.l.b16 %v224
    %v361 = vunpack.c.l.b16 %v225
    %v362 = vunpack.c.l.b16 %v226
    %v363 = vunpack.c.l.b16 %v227
    %v364 = vunpack.c.l.b16 %v228
    %v365 = vunpack.c.l.b16 %v229
    %v366 = vunpack.c.l.b16 %v230
    %v367 = vunpack.c.l.b16 %v231
    %v368 = vunpack.c.l.b16 %v232
    %v369 = vunpack.c.l.b16 %v233
    %v370 = vunpack.c.l.b16 %v234
    %v371 = vunpack.c.l.b16 %v235
    %v372 = vunpack.c.l.b16 %v236
    %v373 = vpack.c.b16 %v358, %v357
    %v374 = vpack.c.b16 %v360, %v359
    %v375 = vpack.c.b16 %v362, %v361
    %v376 = vpack.c.b16 %v364, %v363
    %v377 = vpack.c.b16 %v366, %v365
    %v378 = vpack.c.b16 %v368, %v367
    %v379 = vpack.c.b16 %v370, %v369
    %v380 = vpack.c.b16 %v372, %v371
    %389 = vmatprep.subr.bf16.mxu0 0
    %390 = vmatpush1.bf16.msra.mxu0 %v373
    %391 = vmatprep.subr.bf16.mxu0 0
    %392 = vmatpush1.bf16.msra.mxu0 %v374
    %393 = vmatprep.subr.bf16.mxu0 0
    %394 = vmatpush1.bf16.msra.mxu0 %v375
    %395 = vmatprep.subr.bf16.mxu0 0
    %396 = vmatpush1.bf16.msra.mxu0 %v376
    %397 = vmatprep.subr.bf16.mxu0 0
    %398 = vmatpush1.bf16.msra.mxu0 %v377
    %399 = vmatprep.subr.bf16.mxu0 0
    %400 = vmatpush1.bf16.msra.mxu0 %v378
    %401 = vmatprep.subr.bf16.mxu0 0
    %402 = vmatpush1.bf16.msra.mxu0 %v379
    %403 = vmatprep.subr.bf16.mxu0 0
    %404 = vmatpush1.bf16.msra.mxu0 %v380
    %405 = vmatprep.subr.bf16.mxu0 0
    %406 = vmatpush1.bf16.msra.mxu0 0
    %407 = vmatprep.subr.bf16.mxu0 0
    %408 = vmatpush1.bf16.msra.mxu0 0
    %409 = vmatprep.subr.bf16.mxu0 0
    %410 = vmatpush1.bf16.msra.mxu0 0
    %411 = vmatprep.subr.bf16.mxu0 0
    %412 = vmatpush1.bf16.msra.mxu0 0
    %413 = vmatprep.subr.bf16.mxu0 0
    %414 = vmatpush1.bf16.msra.mxu0 0
    %415 = vmatprep.subr.bf16.mxu0 0
    %416 = vmatpush1.bf16.msra.mxu0 0
    %417 = vmatprep.subr.bf16.mxu0 0
    %418 = vmatpush1.bf16.msra.mxu0 0
    %419 = vmatprep.subr.bf16.mxu0 0
    %420 = vmatpush1.bf16.msra.mxu0 0
    %421 = vmatprep.mubr.bf16.mxu0 0
    %422 = vmatmul.mubr.bf16.gmra.mrb[0].mxu0 %v220
    %v423 = vpop.f32.mrb[0].mxu0
    %v424 = vadd.f32 %v336, %v423
    %v425 = vpop.f32.mrb[0].mxu0
    %v426 = vpop.f32.mrb[0].mxu0
    %v427 = vpop.f32.mrb[0].mxu0
    %428 = vdwg.mxu0
    %v429 = vld [vmem:[%s6] sm:$0x1]
    %v431 = vlaneseq
    %v432 = vshrl.u32 %v431, 7
    %v433 = vsub.s32 0, %v432
    %v434 = vrot.slane %v429, %v433
    %v436 = vadd.f32 %v424, %v434
    %v437 = vtanh.pop %v436
    %v438 = vpack.c.bf16 %v437, %v437
    %439 = vst [vmem:[#allocation11] sm:$0xf] %v438
    %440 = vst [vmem:[#allocation12] sm:$0xff] %v218
    // Predicated region
    $region50: #{tpu_custom_call.1} parent=1 // pred_check
      _
    $region51: #{tpu_custom_call.1} parent=1 // pred_check_branch
      %442 = sbr.rel (0) target = $region53
    $region52: #{tpu_custom_call.1} parent=1 // pred_region
      %s444 = ssub.s32 64, 64
      %445 = vsyncadd [#allocation4], %s444
      %s447 = sshll.u32 [#allocation11], 4
      %s448 = int_to_ptr.vmem [resolvable:$true] %s447
      %450 = dma.vmem_to_hbm [thread:$0]  %s448, 64, %s7, [#allocation4]
    $region53: #{tpu_custom_call.1} parent=1 // pred_fallthru
      _
    // Predicated region
    $region54: #{tpu_custom_call.1} parent=1 // pred_check
      _
    $region55: #{tpu_custom_call.1} parent=1 // pred_check_branch
      %452 = sbr.rel (0) target = $region57
    $region56: #{tpu_custom_call.1} parent=1 // pred_region
      %s454 = ssub.s32 128, 128
      %455 = vsyncadd [#allocation13], %s454
      %s457 = sshll.u32 [#allocation12], 4
      %s458 = int_to_ptr.vmem [resolvable:$true] %s457
      %460 = dma.vmem_to_hbm [thread:$0]  %s458, 128, %s8, [#allocation13]
    $region57: #{tpu_custom_call.1} parent=1 // pred_fallthru
      _
    // Predicated region
    $region58: #{tpu_custom_call.1} parent=1 // pred_check
      _
    $region59: #{tpu_custom_call.1} parent=1 // pred_check_branch
      %462 = sbr.rel (0) target = $region61
    $region60: #{tpu_custom_call.1} parent=1 // pred_region
      %463 = dma.done [#allocation4], 64
    $region61: #{tpu_custom_call.1} parent=1 // pred_fallthru
      _
    // Predicated region
    $region62: #{tpu_custom_call.1} parent=1 // pred_check
      _
    $region63: #{tpu_custom_call.1} parent=1 // pred_check_branch
      %465 = sbr.rel (0) target = $region65
    $region64: #{tpu_custom_call.1} parent=1 // pred_region
      %466 = dma.done [#allocation13], 128
    $region65: #{tpu_custom_call.1} parent=1 // pred_fallthru
      _
    %467 = vsyncpa [#allocation3], 1
    %468 = vsyncpa [#allocation6], 1
    %469 = vsyncpa [#allocation9], 1
    %470 = vsyncpa [#allocation4], 1
    %471 = vsyncpa [#allocation13], 1

</llo_original>
